<compile_context>
chip_gen: v7x
topology: tpu7x:2x2x1
jax: 0.10.0
libtpu: 0.0.40
codegen_flags: <defaults>
</compile_context>

<pallas_src>
import jax
import jax.numpy as jnp
from jax.experimental import pallas as pl
from jax.experimental.pallas import tpu as pltpu


# ----------------------------------------------------------------------------
# Kernels
# ----------------------------------------------------------------------------
def _invconv_mask_kernel(m_ref, x_ref, mask_ref, o_ref):
    # m_ref   : (C, C)       channel-mixing matrix (same block every grid step)
    # x_ref   : (1, C, tT)   one (T-tile, batch) block, T on lanes
    # mask_ref: (1, 1, tT)   arbitrary time mask for this tile
    # o_ref   : (1, C, tT)
    z = jnp.dot(m_ref[...], x_ref[0], preferred_element_type=jnp.float32)
    o_ref[0] = (z * mask_ref[0]).astype(o_ref.dtype)


def _invconv_len_kernel(len_ref, m_ref, x_ref, o_ref):
    # len_ref : (B,) int32 in SMEM (scalar prefetch) -- per-batch valid length.
    # Mask is generated in-kernel (prefix mask), no mask DMA stream.
    tile_t = x_ref.shape[-1]
    b = pl.program_id(1)
    t0 = pl.program_id(0) * tile_t
    seq_len = len_ref[b]

    @pl.when(t0 >= seq_len)
    def _():  # fully padded tail tile: skip the matmul, just zero-fill
        o_ref[...] = jnp.zeros_like(o_ref)

    @pl.when(t0 < seq_len)
    def _():
        z = jnp.dot(m_ref[...], x_ref[0], preferred_element_type=jnp.float32)
        lane = t0 + jax.lax.broadcasted_iota(jnp.int32, (1, tile_t), 1)
        z = jnp.where(lane < seq_len, z, 0.0)
        o_ref[0] = z.astype(o_ref.dtype)


# ----------------------------------------------------------------------------
# VMEM budgeting / tiling
# ----------------------------------------------------------------------------
def _vmem_capacity_bytes():
    try:
        return int(pltpu.get_tpu_info().vmem_capacity_bytes)
    except Exception:
        return 64 << 20  # conservative fallback: assume v7x's 64 MiB


def _vmem_limit_target():
    """Scoped-VMEM target: ~48 MiB on v7x (64 MiB phys), 64 MiB on v5e/v6e."""
    cap = _vmem_capacity_bytes()
    return int(max(min(cap - (16 << 20), 64 << 20), 16 << 20))


def _per_t_bytes(C, itemsize):
    # Double-buffered x + out + mask blocks, plus the f32 matmul-result temp.
    return 2 * (2 * C + 1) * itemsize + 4 * C


def _pick_tile_t(T, C, itemsize, budget):
    """Largest lane-dense (multiple-of-128) T tile fitting `budget` bytes.
    Prefers tiles that divide T exactly; tiny / awkward T -> one full block."""
    if T <= 512:
        return T                                        # single full-extent block
    per_t = _per_t_bytes(C, itemsize)
    cap = (max(budget, 1) // per_t) // 128 * 128
    cap = max(128, min(cap, 8192))
    if T % 128 == 0:
        cap = min(cap, T)
    elif cap > (T // 128) * 128:
        return T                     # budget covers all of T but T isn't lane-dense
    for cand in range(cap, 127, -128):                  # prefer exact divisors
        if T % cand == 0:
            return cand
    return cap                       # ragged last tile; OOB lanes clipped on store


# ----------------------------------------------------------------------------
# pallas_call wrapper
# ----------------------------------------------------------------------------
def _invconv_apply(M, x, mask=None, lengths=None):
    B, C, T = x.shape
    itemsize = jnp.dtype(x.dtype).itemsize

    vmem_target = _vmem_limit_target()
    tile_budget = vmem_target - (4 << 20) - 2 * C * C * itemsize
    tile_t = _pick_tile_t(T, C, itemsize, tile_budget)

    num_t = pl.cdiv(T, tile_t)
    grid = (num_t, B)  # T-tiles leading -> balanced megacore split on v7x

    vmem_need = (_per_t_bytes(C, itemsize) * tile_t
                 + 2 * C * C * itemsize          # double-buffered M block
                 + (4 << 20))                    # Mosaic internal scratch headroom
    vmem_limit = int(min(max(vmem_need, 8 << 20), _vmem_capacity_bytes() - (8 << 20)))

    cparams = pltpu.CompilerParams(
        dimension_semantics=("parallel", "parallel"),
        vmem_limit_bytes=vmem_limit)
    out_shape = jax.ShapeDtypeStruct((B, C, T), x.dtype)

    if lengths is not None:
        # Scalar-prefetch lengths; mask generated in-kernel.
        return pl.pallas_call(
            _invconv_len_kernel,
            out_shape=out_shape,
            grid_spec=pltpu.PrefetchScalarGridSpec(
                num_scalar_prefetch=1,
                grid=grid,
                in_specs=[
                    pl.BlockSpec((C, C), lambda tt, b, lens: (0, 0)),
                    pl.BlockSpec((1, C, tile_t), lambda tt, b, lens: (b, 0, tt)),
                ],
                out_specs=pl.BlockSpec((1, C, tile_t),
                                       lambda tt, b, lens: (b, 0, tt)),
            ),
            compiler_params=cparams,
        )(lengths.astype(jnp.int32), M, x)

    # General (arbitrary) mask path: mask DMA'd alongside x.
    return pl.pallas_call(
        _invconv_mask_kernel,
        out_shape=out_shape,
        grid_spec=pltpu.PrefetchScalarGridSpec(
            num_scalar_prefetch=0,
            grid=grid,
            in_specs=[
                pl.BlockSpec((C, C), lambda tt, b: (0, 0)),
                pl.BlockSpec((1, C, tile_t), lambda tt, b: (b, 0, tt)),
                pl.BlockSpec((1, 1, tile_t), lambda tt, b: (b, 0, tt)),
            ],
            out_specs=pl.BlockSpec((1, C, tile_t), lambda tt, b: (b, 0, tt)),
        ),
        compiler_params=cparams,
    )(M, x, mask)


# ----------------------------------------------------------------------------
# Module-level forward
# ----------------------------------------------------------------------------
def _mixing_matrix(weight, channels, n_split):
    """Expand the (n_split, n_split) weight into the equivalent (C, C) matrix
    for the module's view/permute/1x1-conv/permute/view sequence."""
    c, ns = channels, n_split
    cidx = jnp.arange(c)
    a = cidx // (c // 2)              # which half of the channel axis
    r = cidx % (c // 2)
    g = r // (ns // 2)                # group index (c // n_split groups)
    s = r % (ns // 2)
    j = a * (ns // 2) + s             # split index inside the group
    same_group = (g[:, None] == g[None, :]).astype(weight.dtype)
    return weight[j[:, None], j[None, :]] * same_group


def invconv_near_forward(weight, x, x_mask=None, x_lengths=None, *, n_split=4,
                         no_jacobian=False, reverse=False):
    """Pallas InvConvNear forward.
    x: (B, C, T); x_mask: (B, 1, T) or None; x_lengths: optional (B,) ints
    (used only when x_mask is None, enables the in-kernel prefix-mask path)."""
    b, c, t = x.shape
    assert c % n_split == 0

    if x_mask is not None:
        mask = x_mask.astype(x.dtype)
        x_len = jnp.sum(mask, axis=(1, 2)).astype(jnp.float32)
        lengths = None
    else:
        mask = None
        lengths = (x_lengths.astype(jnp.int32) if x_lengths is not None
                   else jnp.full((b,), t, jnp.int32))
        x_len = lengths.astype(jnp.float32)

    w32 = weight.astype(jnp.float32)
    if reverse:
        w = jnp.linalg.inv(w32)
        logdet = None
    else:
        w = w32
        if no_jacobian:
            logdet = jnp.zeros_like(x_len)
        else:
            sign, logabs = jnp.linalg.slogdet(w32)
            logdet_w = jnp.where(sign > 0, logabs, jnp.nan)   # torch.logdet semantics
            logdet = logdet_w * (c / n_split) * x_len

    M = _mixing_matrix(w, c, n_split).astype(x.dtype)
    z = _invconv_apply(M, x, mask=mask, lengths=lengths)
    return z, logdet


# ----------------------------------------------------------------------------
# Pure-JAX reference (transcription of the PyTorch module) for validation
# ----------------------------------------------------------------------------
def _reference_forward(weight, x, x_mask, n_split):
    b, c, t = x.shape
    x_len = jnp.sum(x_mask, axis=(1, 2))
    xr = x.reshape(b, 2, c // n_split, n_split // 2, t)
    xr = jnp.transpose(xr, (0, 1, 3, 2, 4)).reshape(b, n_split, c // n_split, t)
    z = jnp.einsum('oi,bigt->bogt', weight, xr)
    z = z.reshape(b, 2, n_split // 2, c // n_split, t)
    z = jnp.transpose(z, (0, 1, 3, 2, 4)).reshape(b, c, t) * x_mask
    sign, logabs = jnp.linalg.slogdet(weight)
    logdet = jnp.where(sign > 0, logabs, jnp.nan) * (c / n_split) * x_len
    return z, logdet


if __name__ == "__main__":
    B, C, T, N_SPLIT = 2, 4, 16, 4

    key = jax.random.PRNGKey(0)
    kw, kx = jax.random.split(key)

    # Module init: QR of a random normal matrix, sign-fixed so det > 0.
    w_rand = jax.random.normal(kw, (N_SPLIT, N_SPLIT), jnp.float32)
    w_init, _ = jnp.linalg.qr(w_rand)
    w_init = jnp.where(jnp.linalg.det(w_init) < 0,
                       w_init.at[:, 0].multiply(-1.0), w_init)

    x = jax.random.normal(kx, (B, C, T), jnp.float32)
    lengths = jnp.array([T, T - 4], jnp.int32)
    t_idx = jnp.arange(T)[None, :]
    x_mask = (t_idx < lengths[:, None]).astype(jnp.float32)[:, None, :]

    # Reference.
    z_ref, logdet_ref = _reference_forward(w_init, x, x_mask, N_SPLIT)

    # Path 1: arbitrary-mask (mask DMA) kernel.
    z, logdet = invconv_near_forward(w_init, x, x_mask, n_split=N_SPLIT)
    z = jax.block_until_ready(z)
    assert z.shape == (B, C, T), z.shape
    assert jnp.allclose(z, z_ref, atol=1e-5), float(jnp.max(jnp.abs(z - z_ref)))
    assert jnp.allclose(logdet, logdet_ref, atol=1e-4), (logdet, logdet_ref)

    # Path 2: scalar-prefetch lengths kernel (mask generated in-kernel).
    z2, logdet2 = invconv_near_forward(w_init, x, x_mask=None,
                                       x_lengths=lengths, n_split=N_SPLIT)
    z2 = jax.block_until_ready(z2)
    assert jnp.allclose(z2, z_ref, atol=1e-5), float(jnp.max(jnp.abs(z2 - z_ref)))
    assert jnp.allclose(logdet2, logdet_ref, atol=1e-4), (logdet2, logdet_ref)

    # Invertibility round-trip: reverse(forward(x)) == x * mask.
    x_back, _ = invconv_near_forward(w_init, z, x_mask, n_split=N_SPLIT,
                                     reverse=True)
    x_back = jax.block_until_ready(x_back)
    assert jnp.allclose(x_back, x * x_mask, atol=1e-4), \
        float(jnp.max(jnp.abs(x_back - x * x_mask)))

    print("KERNEL_OK")
</pallas_src>

<mosaic_0001>
module attributes {stable_mosaic.version = 11 : i64} {
  func.func @_invconv_mask_kernel(%arg0: i32, %arg1: i32, %arg2: memref<4x4xf32, #tpu.memory_space<vmem>>, %arg3: memref<1x4x16xf32, #tpu.memory_space<vmem>>, %arg4: memref<1x1x16xf32, #tpu.memory_space<vmem>>, %arg5: memref<1x4x16xf32, #tpu.memory_space<vmem>>) attributes {dimension_semantics = [#tpu.dimension_semantics<parallel>, #tpu.dimension_semantics<parallel>], iteration_bounds = array<i64: 1, 2>, scalar_prefetch = 0 : i64, scratch_operands = 0 : i64, tpu.core_type = #tpu.core_type<tc>, window_params = [{pipeline_mode = #tpu.pipeline_mode<synchronous>, transform_indices = @transform_0, window_bounds = array<i64: 4, 4>}, {transform_indices = @transform_1, window_bounds = array<i64: 1, 4, 16>}, {transform_indices = @transform_2, window_bounds = array<i64: 1, 1, 16>}, {transform_indices = @transform_3, window_bounds = array<i64: 1, 4, 16>}]} {
    %c0 = arith.constant 0 : index
    %c0_0 = arith.constant 0 : index
    %0 = vector.load %arg2[%c0, %c0_0] : memref<4x4xf32, #tpu.memory_space<vmem>>, vector<4x4xf32>
    %c0_1 = arith.constant 0 : index
    %c0_2 = arith.constant 0 : index
    %c0_3 = arith.constant 0 : index
    %1 = vector.load %arg3[%c0_1, %c0_2, %c0_3] : memref<1x4x16xf32, #tpu.memory_space<vmem>>, vector<1x4x16xf32>
    %2 = vector.shape_cast %1 : vector<1x4x16xf32> to vector<4x16xf32>
    %cst = arith.constant dense<0.000000e+00> : vector<4x16xf32>
    %3 = tpu.matmul %0, %2, %cst {dimension_numbers = #tpu.dot_dimension_numbers<[1], [0], [0], [1], [0, 0, 1, 1], [], []>} : vector<4x4xf32>, vector<4x16xf32>, vector<4x16xf32> -> vector<4x16xf32>
    %c0_4 = arith.constant 0 : index
    %c0_5 = arith.constant 0 : index
    %c0_6 = arith.constant 0 : index
    %4 = vector.load %arg4[%c0_4, %c0_5, %c0_6] : memref<1x1x16xf32, #tpu.memory_space<vmem>>, vector<1x1x16xf32>
    %5 = vector.shape_cast %4 : vector<1x1x16xf32> to vector<1x16xf32>
    %6 = vector.broadcast %5 : vector<1x16xf32> to vector<4x16xf32>
    %7 = arith.mulf %3, %6 : vector<4x16xf32>
    %c0_7 = arith.constant 0 : index
    %c0_8 = arith.constant 0 : index
    %c0_9 = arith.constant 0 : index
    %8 = vector.load %arg5[%c0_7, %c0_8, %c0_9] : memref<1x4x16xf32, #tpu.memory_space<vmem>>, vector<1x4x16xf32>
    %9 = vector.shape_cast %8 : vector<1x4x16xf32> to vector<4x16xf32>
    %10 = vector.shape_cast %7 : vector<4x16xf32> to vector<1x4x16xf32>
    tpu.vector_store %arg5[%c0_7, %c0_8, %c0_9], %10 {strides = array<i32>} : memref<1x4x16xf32, #tpu.memory_space<vmem>>, vector<1x4x16xf32>,
    return
  }
  func.func @transform_0(%arg0: i32, %arg1: i32) -> (i32, i32) {
    %c0_i32 = arith.constant 0 : i32
    %c0_i32_0 = arith.constant 0 : i32
    %c0_i32_1 = arith.constant 0 : i32
    return %c0_i32, %c0_i32_0 : i32, i32
  }
  func.func @transform_1(%arg0: i32, %arg1: i32) -> (i32, i32, i32) {
    %c0_i32 = arith.constant 0 : i32
    %c0_i32_0 = arith.constant 0 : i32
    return %arg1, %c0_i32, %arg0 : i32, i32, i32
  }
  func.func @transform_2(%arg0: i32, %arg1: i32) -> (i32, i32, i32) {
    %c0_i32 = arith.constant 0 : i32
    %c0_i32_0 = arith.constant 0 : i32
    return %arg1, %c0_i32, %arg0 : i32, i32, i32
  }
  func.func @transform_3(%arg0: i32, %arg1: i32) -> (i32, i32, i32) {
    %c0_i32 = arith.constant 0 : i32
    %c0_i32_0 = arith.constant 0 : i32
    return %arg1, %c0_i32, %arg0 : i32, i32, i32
  }
}

</mosaic_0001>

<llo_original>
// kernel: tpu_custom_call.1
$region0: #{tpu_custom_call.1}
  #allocation0 [shape = 'u32[]', space=smem, size = 0x4, offset = 0x4, fixed_abs, tag = 'smem constant byte address 0x4 - core index']
  #allocation1 [shape = 'u32[144,128]{1,0:T(1,128)}', space=vmem, size = 0x12000, scoped, tag = 'internal scratch']
  %s0 = inlined_call_operand.hbm [shape: f32[4,4], index: 0, kind: input, shape index: {}]
  %s1 = inlined_call_operand.hbm [shape: f32[2,4,16], index: 1, kind: input, shape index: {}]
  %s2 = inlined_call_operand.vmem [shape: f32[2,1,16], index: 2, kind: input, shape index: {}]
  %s3 = inlined_call_operand.hbm [shape: f32[2,4,16], index: 3, kind: output, shape index: {}]
  %s4 = sld [smem:[#allocation0]]
  $region53: #{tpu_custom_call.1} parent=0
    _
  %s6 = ssub.s32 1, %s4
  %s7 = scalar_select 0, %s6, %s4
  $region1: #{tpu_custom_call.1} parent=0
    #allocation2 [shape = 'u8[2048]{0}', space=vmem, size = 0x800, scoped, tag = 'input window, operand 0, single buffered']
    #allocation3 [shape = 's32[2]{0}', space=sflag, size = 0x8, scoped, tag = 'scoped memory for tpu_custom_call.1']
    #allocation4 [shape = 's32[2]{0}', space=sflag, size = 0x8, scoped, tag = 'scoped memory for tpu_custom_call.1']
    #allocation5 [shape = 'u8[4096]{0}', space=vmem, size = 0x1000, scoped, tag = 'input window, operand 1']
    #allocation6 [shape = 's32[2]{0}', space=sflag, size = 0x8, scoped, tag = 'scoped memory for tpu_custom_call.1']
    #allocation7 [shape = 'u8[4096]{0}', space=vmem, size = 0x1000, scoped, tag = 'output window, operand 0']
    %8 = vsyncpa [#allocation3], 0
    %9 = vsyncpa [#allocation6], 0
    %s10 = scalar_lea.sflag [#allocation6], 1
    %11 = vsyncpa %s10, 0
    %12 = vsyncpa [#allocation4], 0
    %s13 = scalar_lea.sflag [#allocation4], 1
    %14 = vsyncpa %s13, 0
    loop: start=0, step=1, limit=4
    $region2: #{tpu_custom_call.1} parent=1 // loop_pre_header
      _
    $region3: #{tpu_custom_call.1} parent=1 // loop_header
      %s16 = sphi 0, %s20
      %p17 = scmp.ge.s32.totalorder %s16, 4
      %s23 = sphi 0, %s35
      %s24 = sphi 0, %s31
      %s25 = sphi 0, %s23
      %s26 = sphi 0, %s24
      %s27 = sphi 0, %s25
      %s28 = sphi 0, %s26
      %s36 = sphi 0, %s36
      %s38 = sphi 0, %s36
      %s39 = sphi 0, %s38
      %s53 = sphi 0, %s39
      %s61 = sphi 0, %s63
      %s64 = sphi 0, %s61
      %s65 = sphi 0, %s64
      %s81 = sphi 0, %s65
      %s89 = sphi 0, %s91
      %s92 = sphi 0, %s89
      %s93 = sphi 0, %s92
      %s109 = sphi 0, %s93
      %s117 = sphi 0, %s119
      %s120 = sphi 0, %s117
      %s121 = sphi 0, %s120
      %s137 = sphi 0, %s121
    $region4: #{tpu_custom_call.1} parent=1 // loop_header_branch
      %19 = sbr.rel (%p17) target = $region8
    $region5: #{tpu_custom_call.1} parent=1 // loop_body
      %s21 = ssub.s32 %s16, 1
      %s22 = ssub.s32 %s16, 2
      %s29 = sadd.s32 1, %s24
      %p30 = scmp.ge.s32.totalorder %s29, 2
      %s31 = scalar_select %p30, 0, %s29
      %s32 = sadd.s32 1, %s23
      %s33 = scalar_select %p30, %s32, %s23
      %p34 = scmp.ge.s32.totalorder %s33, 1
      %s35 = scalar_select %p34, 0, %s33
      %s37 = sadd.s32 %s36, 1
      %p40 = scmp.eq.s32.totalorder %s16, 1
      %p41 = scmp.ne.s32.totalorder %s36, %s38
      %p42 = scmp.eq.s32.totalorder %s16, 0
      %p43 = por %p41, %p42
      %p44 = scmp.ne.s32.totalorder %s36, %s38
      %p45 = scmp.eq.s32.totalorder %s21, 1
      %p46 = por %p44, %p45
      %p47 = scmp.ne.s32.totalorder %s38, %s39
      %p48 = scmp.eq.s32.totalorder %s21, 0
      %p49 = por %p47, %p48
      %p50 = scmp.ne.s32.totalorder %s38, %s39
      %p51 = scmp.eq.s32.totalorder %s22, 1
      %p52 = por %p50, %p51
      %p54 = scmp.ne.s32.totalorder %s39, %s53
      %p55 = scmp.eq.s32.totalorder %s22, 0
      %p56 = por %p54, %p55
      %s57 = ssub.s32 %s24, %s31
      %s58 = ssub.s32 %s23, %s35
      %s59 = sor.u32 %s57, %s58
      %p60 = scmp.eq.s32.totalorder %s59, 0
      %s62 = sadd.s32 %s61, 1
      %s63 = scalar_select %p60, %s61, %s62
      %p66 = pneg %p60
      %p67 = scmp.eq.s32.totalorder %s16, 1
      %p68 = por %p66, %p67
      %p69 = scmp.ne.s32.totalorder %s61, %s64
      %p70 = scmp.eq.s32.totalorder %s16, 0
      %p71 = por %p69, %p70
      %p72 = scmp.ne.s32.totalorder %s61, %s64
      %p73 = scmp.eq.s32.totalorder %s21, 1
      %p74 = por %p72, %p73
      %p75 = scmp.ne.s32.totalorder %s64, %s65
      %p76 = scmp.eq.s32.totalorder %s21, 0
      %p77 = por %p75, %p76
      %p78 = scmp.ne.s32.totalorder %s64, %s65
      %p79 = scmp.eq.s32.totalorder %s22, 1
      %p80 = por %p78, %p79
      %p82 = scmp.ne.s32.totalorder %s65, %s81
      %p83 = scmp.eq.s32.totalorder %s22, 0
      %p84 = por %p82, %p83
      %s85 = ssub.s32 %s24, %s31
      %s86 = ssub.s32 %s23, %s35
      %s87 = sor.u32 %s85, %s86
      %p88 = scmp.eq.s32.totalorder %s87, 0
      %s90 = sadd.s32 %s89, 1
      %s91 = scalar_select %p88, %s89, %s90
      %p94 = pneg %p88
      %p95 = scmp.eq.s32.totalorder %s16, 1
      %p96 = por %p94, %p95
      %p97 = scmp.ne.s32.totalorder %s89, %s92
      %p98 = scmp.eq.s32.totalorder %s16, 0
      %p99 = por %p97, %p98
      %p100 = scmp.ne.s32.totalorder %s89, %s92
      %p101 = scmp.eq.s32.totalorder %s21, 1
      %p102 = por %p100, %p101
      %p103 = scmp.ne.s32.totalorder %s92, %s93
      %p104 = scmp.eq.s32.totalorder %s21, 0
      %p105 = por %p103, %p104
      %p106 = scmp.ne.s32.totalorder %s92, %s93
      %p107 = scmp.eq.s32.totalorder %s22, 1
      %p108 = por %p106, %p107
      %p110 = scmp.ne.s32.totalorder %s93, %s109
      %p111 = scmp.eq.s32.totalorder %s22, 0
      %p112 = por %p110, %p111
      %s113 = ssub.s32 %s24, %s31
      %s114 = ssub.s32 %s23, %s35
      %s115 = sor.u32 %s113, %s114
      %p116 = scmp.eq.s32.totalorder %s115, 0
      %s118 = sadd.s32 %s117, 1
      %s119 = scalar_select %p116, %s117, %s118
      %p122 = pneg %p116
      %p123 = scmp.eq.s32.totalorder %s16, 1
      %p124 = por %p122, %p123
      %p125 = scmp.ne.s32.totalorder %s117, %s120
      %p126 = scmp.eq.s32.totalorder %s16, 0
      %p127 = por %p125, %p126
      %p128 = scmp.ne.s32.totalorder %s117, %s120
      %p129 = scmp.eq.s32.totalorder %s21, 1
      %p130 = por %p128, %p129
      %p131 = scmp.ne.s32.totalorder %s120, %s121
      %p132 = scmp.eq.s32.totalorder %s21, 0
      %p133 = por %p131, %p132
      %p134 = scmp.ne.s32.totalorder %s120, %s121
      %p135 = scmp.eq.s32.totalorder %s22, 1
      %p136 = por %p134, %p135
      %p138 = scmp.ne.s32.totalorder %s121, %s137
      %p139 = scmp.eq.s32.totalorder %s22, 0
      %p140 = por %p138, %p139
      %p141 = scmp.le.s32.totalorder 1, %s16
      %p142 = scmp.lt.s32.totalorder %s16, 3
      %p143 = pnand %p141, %p142
      %p144 = pneg %p143
      // Predicated region
      $region9: #{tpu_custom_call.1} parent=5 // pred_check
        _
      $region10: #{tpu_custom_call.1} parent=5 // pred_check_branch
        %146 = sbr.rel (%p143) target = $region12
      $region11: #{tpu_custom_call.1} parent=5 // pred_region
        %s147 = ssub.s32 %s16, 1
        // Predicated region
        $region13: #{tpu_custom_call.1} parent=11 // pred_check
          %p148 = pneg %p49
        $region14: #{tpu_custom_call.1} parent=11 // pred_check_branch
          %150 = sbr.rel (%p148) target = $region16
        $region15: #{tpu_custom_call.1} parent=11 // pred_region
          %s152 = ssub.s32 64, 64
          %153 = vsyncadd [#allocation3], %s152
          %s155 = sshll.u32 [#allocation2], 4
          %s156 = int_to_ptr.vmem [resolvable:$true] %s155
          %158 = dma.hbm_to_vmem [thread:$0]  %s0, 64, %s156, [#allocation3]
        $region16: #{tpu_custom_call.1} parent=11 // pred_fallthru
          _
      $region12: #{tpu_custom_call.1} parent=5 // pred_fallthru
        _
      %p159 = scmp.lt.s32.totalorder %s16, 2
      // Predicated region
      $region17: #{tpu_custom_call.1} parent=5 // pred_check
        %p160 = pneg %p159
      $region18: #{tpu_custom_call.1} parent=5 // pred_check_branch
        %162 = sbr.rel (%p160) target = $region20
      $region19: #{tpu_custom_call.1} parent=5 // pred_region
        // Predicated region
        $region21: #{tpu_custom_call.1} parent=19 // pred_check
          %p163 = pneg %p71
        $region22: #{tpu_custom_call.1} parent=19 // pred_check_branch
          %165 = sbr.rel (%p163) target = $region24
        $region23: #{tpu_custom_call.1} parent=19 // pred_region
          %s166 = sand.u32 %s61, 1
          %s167 = scalar_lea.sflag [#allocation6], %s166
          %s168 = sand.u32 %s61, 1
          %s169 = smul.addr %s168, 4
          %s170 = scalar_lea.vmem [#allocation5], %s169
          %s172 = ssub.s32 64, 64
          %173 = vsyncadd %s167, %s172
          %s174 = sadd.s32 %s23, %s24
          %s175 = smul.addr %s174, 64
          %s176 = scalar_lea.hbm %s1, %s175
          %s178 = sshll.u32 %s170, 4
          %s179 = int_to_ptr.vmem [resolvable:$true] %s178
          %181 = dma.hbm_to_vmem [thread:$0]  %s176, 64, %s179, %s167
        $region24: #{tpu_custom_call.1} parent=19 // pred_fallthru
          _
        // Predicated region
        $region25: #{tpu_custom_call.1} parent=19 // pred_check
          %p182 = pneg %p99
        $region26: #{tpu_custom_call.1} parent=19 // pred_check_branch
          %184 = sbr.rel (%p182) target = $region28
        $region27: #{tpu_custom_call.1} parent=19 // pred_region
          %p185 = scmp.lt.s32.totalorder %s24, 1
          %s186 = scalar_select %p185, %s24, 1
          %p187 = scmp.lt.s32.totalorder %s23, 0
          %s188 = scalar_select %p187, %s23, 0
          %s189 = sadd.s32 %s188, %s186
          %s190 = scalar_lea.vmem %s2, %s189
        $region28: #{tpu_custom_call.1} parent=19 // pred_fallthru
          _
      $region20: #{tpu_custom_call.1} parent=5 // pred_fallthru
        _
      %p191 = scmp.le.s32.totalorder 1, %s16
      %p192 = scmp.lt.s32.totalorder %s16, 3
      %p193 = pnand %p191, %p192
      %p194 = pneg %p193
      // Predicated region
      $region29: #{tpu_custom_call.1} parent=5 // pred_check
        _
      $region30: #{tpu_custom_call.1} parent=5 // pred_check_branch
        %196 = sbr.rel (%p193) target = $region32
      $region31: #{tpu_custom_call.1} parent=5 // pred_region
        %s197 = ssub.s32 %s16, 1
        // Predicated region
        $region33: #{tpu_custom_call.1} parent=31 // pred_check
          %p198 = pneg %p49
        $region34: #{tpu_custom_call.1} parent=31 // pred_check_branch
          %200 = sbr.rel (%p198) target = $region36
        $region35: #{tpu_custom_call.1} parent=31 // pred_region
          %201 = dma.done [#allocation3], 64
        $region36: #{tpu_custom_call.1} parent=31 // pred_fallthru
          _
        %s202 = sand.u32 %s64, 1
        %s203 = scalar_lea.sflag [#allocation6], %s202
        %s204 = sand.u32 %s64, 1
        %s205 = smul.addr %s204, 4
        %s206 = scalar_lea.vmem [#allocation5], %s205
        // Predicated region
        $region37: #{tpu_custom_call.1} parent=31 // pred_check
          %p207 = pneg %p77
        $region38: #{tpu_custom_call.1} parent=31 // pred_check_branch
          %209 = sbr.rel (%p207) target = $region40
        $region39: #{tpu_custom_call.1} parent=31 // pred_region
          %210 = dma.done %s203, 64
        $region40: #{tpu_custom_call.1} parent=31 // pred_fallthru
          _
        %p211 = pneg %p49
        %p212 = pneg %p46
        %s213 = sand.u32 %s64, 1
        %s214 = scalar_lea.sflag [#allocation6], %s213
        %s215 = sand.u32 %s64, 1
        %s216 = smul.addr %s215, 4
        %s217 = scalar_lea.vmem [#allocation5], %s216
        %p218 = pneg %p77
        %p219 = pneg %p74
        %p220 = scmp.lt.s32.totalorder %s26, 1
        %s221 = scalar_select %p220, %s26, 1
        %p222 = scmp.lt.s32.totalorder %s25, 0
        %s223 = scalar_select %p222, %s25, 0
        %s224 = sadd.s32 %s223, %s221
        %s225 = scalar_lea.vmem %s2, %s224
        %p226 = pneg %p105
        %p227 = pneg %p102
        %p228 = pneg %p133
        %p229 = pneg %p130
        %s230 = sand.u32 %s120, 1
        %s231 = scalar_lea.sflag [#allocation4], %s230
        %s232 = sand.u32 %s120, 1
        %s233 = smul.addr %s232, 4
        %s234 = scalar_lea.vmem [#allocation7], %s233
        %p235 = scmp.lt.s32.totalorder %s26, 1
        %s236 = scalar_select %p235, %s26, 1
        %p237 = scmp.lt.s32.totalorder %s25, 0
        %s238 = scalar_select %p237, %s25, 0
        %s239 = sadd.s32 %s238, %s236
        %s240 = scalar_lea.vmem %s2, %s239
        %v241 = vld [vmem:[#allocation2] sm:$0xf]
        %v242 = vld [vmem:[%s206] sm:$0xf]
        %vm243 = vcmask 31744
        %v245 = vsel %vm243, %v241, 0
        %vm247 = vcmask 1043456
        %v249 = vsel %vm247, %v242, 0
        %251 = vmatprep.subr.mxu0 0.0
        %252 = vmatpush1.msra.mxu0 %v249
        %253 = vmatprep.subr.mxu0 0.0
        %254 = vmatpush1.msra.mxu0 0.0
        %255 = vmatprep.subr.mxu0 0.0
        %256 = vmatpush1.msra.mxu0 0.0
        %257 = vmatprep.subr.mxu0 0.0
        %258 = vmatpush1.msra.mxu0 0.0
        %259 = vmatprep.subr.mxu0 0.0
        %260 = vmatpush1.msra.mxu0 0.0
        %261 = vmatprep.subr.mxu0 0.0
        %262 = vmatpush1.msra.mxu0 0.0
        %263 = vmatprep.subr.mxu0 0.0
        %264 = vmatpush1.msra.mxu0 0.0
        %265 = vmatprep.subr.mxu0 0.0
        %266 = vmatpush1.msra.mxu0 0.0
        %267 = vmatprep.subr.mxu0 0.0
        %268 = vmatpush1.msra.mxu0 0.0
        %269 = vmatprep.subr.mxu0 0.0
        %270 = vmatpush1.msra.mxu0 0.0
        %271 = vmatprep.subr.mxu0 0.0
        %272 = vmatpush1.msra.mxu0 0.0
        %273 = vmatprep.subr.mxu0 0.0
        %274 = vmatpush1.msra.mxu0 0.0
        %275 = vmatprep.subr.mxu0 0.0
        %276 = vmatpush1.msra.mxu0 0.0
        %277 = vmatprep.subr.mxu0 0.0
        %278 = vmatpush1.msra.mxu0 0.0
        %279 = vmatprep.subr.mxu0 0.0
        %280 = vmatpush1.msra.mxu0 0.0
        %281 = vmatprep.subr.mxu0 0.0
        %282 = vmatpush1.msra.mxu0 0.0
        %283 = vmatprep.subr.mxu0 0.0
        %284 = vmatpush1.msra.mxu0 0.0
        %285 = vmatprep.subr.mxu0 0.0
        %286 = vmatpush1.msra.mxu0 0.0
        %287 = vmatprep.subr.mxu0 0.0
        %288 = vmatpush1.msra.mxu0 0.0
        %289 = vmatprep.subr.mxu0 0.0
        %290 = vmatpush1.msra.mxu0 0.0
        %291 = vmatprep.subr.mxu0 0.0
        %292 = vmatpush1.msra.mxu0 0.0
        %293 = vmatprep.subr.mxu0 0.0
        %294 = vmatpush1.msra.mxu0 0.0
        %295 = vmatprep.subr.mxu0 0.0
        %296 = vmatpush1.msra.mxu0 0.0
        %297 = vmatprep.subr.mxu0 0.0
        %298 = vmatpush1.msra.mxu0 0.0
        %299 = vmatprep.subr.mxu0 0.0
        %300 = vmatpush1.msra.mxu0 0.0
        %301 = vmatprep.subr.mxu0 0.0
        %302 = vmatpush1.msra.mxu0 0.0
        %303 = vmatprep.subr.mxu0 0.0
        %304 = vmatpush1.msra.mxu0 0.0
        %305 = vmatprep.subr.mxu0 0.0
        %306 = vmatpush1.msra.mxu0 0.0
        %307 = vmatprep.subr.mxu0 0.0
        %308 = vmatpush1.msra.mxu0 0.0
        %309 = vmatprep.subr.mxu0 0.0
        %310 = vmatpush1.msra.mxu0 0.0
        %311 = vmatprep.subr.mxu0 0.0
        %312 = vmatpush1.msra.mxu0 0.0
        %313 = vmatprep.subr.mxu0 0.0
        %314 = vmatpush1.msra.mxu0 0.0
        %315 = vmatprep.mubr.f32.mxu0 0.0
        %316 = vmatmul.mubr.f32.gmra.mrb[0].mxu0 %v245
        %v317 = vpop.f32.mrb[0].mxu0
        %v318 = vadd.f32 0.0, %v317
        %v319 = vpop.f32.mrb[0].mxu0
        %320 = vdwg.mxu0
        %v321 = vld [vmem:[%s240] sm:$0x1]
        %v323 = vlaneseq
        %v324 = vshrl.u32 %v323, 7
        %v325 = vsub.s32 0, %v324
        %v326 = vrot.slane %v321, %v325
        %v328 = vmul.f32 %v318, %v326
        %vm329 = vcmask 125952
        %330 = vst.msk [vmem:[%s234] sm:$0xf] %vm329, %v328
        %s331 = sand.u32 %s120, 1
        %s332 = scalar_lea.sflag [#allocation4], %s331
        %s333 = sand.u32 %s120, 1
        %s334 = smul.addr %s333, 4
        %s335 = scalar_lea.vmem [#allocation7], %s334
        // Predicated region
        $region41: #{tpu_custom_call.1} parent=31 // pred_check
          %p336 = pneg %p130
        $region42: #{tpu_custom_call.1} parent=31 // pred_check_branch
          %338 = sbr.rel (%p336) target = $region44
        $region43: #{tpu_custom_call.1} parent=31 // pred_region
          %s340 = ssub.s32 64, 64
          %341 = vsyncadd %s332, %s340
          %s342 = sadd.s32 %s25, %s26
          %s343 = smul.addr %s342, 64
          %s344 = scalar_lea.hbm %s3, %s343
          %s346 = sshll.u32 %s335, 4
          %s347 = int_to_ptr.vmem [resolvable:$true] %s346
          %349 = dma.vmem_to_hbm [thread:$0]  %s347, 64, %s344, %s332
        $region44: #{tpu_custom_call.1} parent=31 // pred_fallthru
          _
      $region32: #{tpu_custom_call.1} parent=5 // pred_fallthru
        _
      %p350 = scmp.le.s32.totalorder 2, %s16
      // Predicated region
      $region45: #{tpu_custom_call.1} parent=5 // pred_check
        %p351 = pneg %p350
      $region46: #{tpu_custom_call.1} parent=5 // pred_check_branch
        %353 = sbr.rel (%p351) target = $region48
      $region47: #{tpu_custom_call.1} parent=5 // pred_region
        %s354 = ssub.s32 %s16, 2
        // Predicated region
        $region49: #{tpu_custom_call.1} parent=47 // pred_check
          %p355 = pneg %p136
        $region50: #{tpu_custom_call.1} parent=47 // pred_check_branch
          %357 = sbr.rel (%p355) target = $region52
        $region51: #{tpu_custom_call.1} parent=47 // pred_region
          %s358 = sand.u32 %s121, 1
          %s359 = scalar_lea.sflag [#allocation4], %s358
          %s360 = sand.u32 %s121, 1
          %s361 = smul.addr %s360, 4
          %s362 = scalar_lea.vmem [#allocation7], %s361
          %363 = dma.done %s359, 64
        $region52: #{tpu_custom_call.1} parent=47 // pred_fallthru
          _
      $region48: #{tpu_custom_call.1} parent=5 // pred_fallthru
        _
    $region6: #{tpu_custom_call.1} parent=1 // loop_footer
      %s20 = sadd.s32 1, %s16
    $region7: #{tpu_custom_call.1} parent=1 // loop_footer_branch
      %15 = sbr.rel target = $region3
    $region8: #{tpu_custom_call.1} parent=1 // loop_exit
      _
    %364 = vsyncpa [#allocation3], 1
    %s365 = scalar_lea.sflag [#allocation3], 1
    %366 = vsyncpa %s365, 1
    %367 = vsyncpa [#allocation6], 1
    %s368 = scalar_lea.sflag [#allocation6], 1
    %369 = vsyncpa %s368, 1
    %370 = vsyncpa [#allocation4], 1
    %s371 = scalar_lea.sflag [#allocation4], 1
    %372 = vsyncpa %s371, 1

</llo_original>
